<compile_context>
chip_gen: v7x
topology: tpu7x:2x2x1
jax: 0.10.0
libtpu: 0.0.40
codegen_flags: <defaults>
</compile_context>

<pallas_src>
import jax
import jax.numpy as jnp
from jax.experimental import pallas as pl
from jax.experimental.pallas import tpu as pltpu


def _hebbian_mlp_kernel(x_ref, w1t_ref, w2t_ref, out_ref):
    # x_ref: (TB, I), w1t_ref: (I, H), w2t_ref: (H, O), out_ref: (TB, O)
    x = x_ref[...]
    w1t = w1t_ref[...]
    w2t = w2t_ref[...]

    # lin1 + sigmoid: MXU matmul with f32 accumulation, EUP transcendental.
    z1 = jnp.dot(x, w1t, preferred_element_type=jnp.float32)          # (TB, H)
    h = jax.nn.sigmoid(z1)                                            # f32

    # lin2 + numerically-stable softmax over axis 1 (torch.nn.Softmax(dim=1)).
    z2 = jnp.dot(h.astype(w2t.dtype), w2t,
                 preferred_element_type=jnp.float32)                  # (TB, O)
    z2 = z2 - jnp.max(z2, axis=1, keepdims=True)
    e = jnp.exp(z2)
    denom = jnp.sum(e, axis=1, keepdims=True)
    # Exact f32 divide (the approx reciprocal previously broke torch parity).
    out_ref[...] = (e / denom).astype(out_ref.dtype)


def hebbian_mlp_forward(x, w1, w2, *, tile_b=2048, cast_to_bf16=True):
    """Forward pass of HebbianMultiLayerPerceptron (bias=False, sigmoid).

    x : (..., num_inputs)          -- any leading shape, flattened like the module
    w1: (num_hidden, num_inputs)   -- PyTorch Linear layout
    w2: (num_outputs, num_hidden)  -- PyTorch Linear layout
    """
    num_hidden, num_inputs = w1.shape
    num_outputs, w2_in = w2.shape
    assert w2_in == num_hidden

    x2d = x.reshape(-1, num_inputs)
    b = x2d.shape[0]

    # One-time layout plumbing in the wrapper: transpose weights to (I,H)/(H,O).
    w1t = jnp.transpose(w1)
    w2t = jnp.transpose(w2)

    # bf16 HBM streams (halves dominant HBM bytes); f32 accumulation in-kernel.
    if cast_to_bf16:
        x2d = x2d.astype(jnp.bfloat16)
        w1t = w1t.astype(jnp.bfloat16)
        w2t = w2t.astype(jnp.bfloat16)

    # Batch tile: multiple of 8 sublanes, no bigger than the (rounded-up) batch.
    tb = max(8, min(int(tile_b), b))
    tb = ((tb + 7) // 8) * 8
    grid_b = pl.cdiv(b, tb)   # tail block is partial: OOB reads, masked writes

    # Explicit VMEM budget: double-buffered X + out blocks plus lane-padded
    # intermediates (H=32 and O=10 both pad to 128 lanes in VMEM).
    xbytes = x2d.dtype.itemsize
    wbytes = w1t.dtype.itemsize
    vmem_est = (
        2 * tb * num_inputs * xbytes            # X double buffer
        + 2 * tb * 128 * 4                      # output block (lane-padded)
        + 4 * tb * 128 * 4                      # z1 / h / z2 / e intermediates
        + 2 * (num_inputs * num_hidden + num_hidden * num_outputs) * wbytes
    )
    vmem_limit = int(max(32 << 20, min(2 * vmem_est, 64 << 20)))

    cost = pl.CostEstimate(
        flops=2 * b * (num_inputs * num_hidden + num_hidden * num_outputs),
        transcendentals=b * (num_hidden + num_outputs),
        bytes_accessed=(b * num_inputs * xbytes + b * num_outputs * 4
                        + (num_inputs * num_hidden
                           + num_hidden * num_outputs) * wbytes),
    )

    out = pl.pallas_call(
        _hebbian_mlp_kernel,
        out_shape=jax.ShapeDtypeStruct((b, num_outputs), jnp.float32),
        grid_spec=pltpu.PrefetchScalarGridSpec(
            num_scalar_prefetch=0,
            grid=(grid_b,),
            in_specs=[
                # X streams through VMEM one batch tile at a time.
                pl.BlockSpec((tb, num_inputs), lambda i: (i, 0)),
                # Weights: same block every step -> resident in VMEM.
                pl.BlockSpec((num_inputs, num_hidden), lambda i: (0, 0)),
                pl.BlockSpec((num_hidden, num_outputs), lambda i: (0, 0)),
            ],
            out_specs=pl.BlockSpec((tb, num_outputs), lambda i: (i, 0)),
        ),
        compiler_params=pltpu.CompilerParams(
            # Batch tiles are independent -> shard across TCs on megacore parts.
            dimension_semantics=("parallel",),
            vmem_limit_bytes=vmem_limit,
        ),
        cost_estimate=cost,
    )(x2d, w1t, w2t)
    # TODO(synk): if a Mosaic dump shows "parallel" not splitting the batch
    # across v7x's 2 TensorCores, switch to an explicit pl.core_map /
    # CORE_PARALLEL leading axis.
    return out


def _reference_forward_f32(x, w1, w2):
    """Exact f32 module semantics (torch forward equivalent)."""
    num_inputs = w1.shape[1]
    x2d = x.reshape(-1, num_inputs).astype(jnp.float32)
    h = jax.nn.sigmoid(x2d @ w1.T.astype(jnp.float32))
    return jax.nn.softmax(h @ w2.T.astype(jnp.float32), axis=1)


def _reference_forward_bf16(x, w1, w2):
    """Reference with the same bf16 casts the kernel's default path uses."""
    num_inputs = w1.shape[1]
    x2d = x.reshape(-1, num_inputs).astype(jnp.bfloat16)
    w1t = w1.T.astype(jnp.bfloat16)
    w2t = w2.T.astype(jnp.bfloat16)
    z1 = jnp.dot(x2d, w1t, preferred_element_type=jnp.float32)
    h = jax.nn.sigmoid(z1)
    z2 = jnp.dot(h.astype(jnp.bfloat16), w2t, preferred_element_type=jnp.float32)
    return jax.nn.softmax(z2, axis=1)


if __name__ == "__main__":
    # Small shapes consistent with the module (flattened "images" as inputs).
    # batch=20 with tile_b=8 exercises the multi-step pipelined grid AND the
    # un-padded partial tail block (rows 16..19 valid, 20..23 masked).
    batch = 20
    num_inputs = 64
    num_hidden = 32
    num_outputs = 10

    key = jax.random.PRNGKey(0)
    kx, k1, k2 = jax.random.split(key, 3)

    x = jax.random.normal(kx, (batch, num_inputs), dtype=jnp.float32)
    bound1 = 1.0 / (num_inputs ** 0.5)
    bound2 = 1.0 / (num_hidden ** 0.5)
    w1 = jax.random.uniform(k1, (num_hidden, num_inputs), jnp.float32,
                            minval=-bound1, maxval=bound1)
    w2 = jax.random.uniform(k2, (num_outputs, num_hidden), jnp.float32,
                            minval=-bound2, maxval=bound2)
    # TODO(synk): bias=True / tanh / relu / identity configs only add a
    # broadcast-add or a different elementwise op in the same kernel body;
    # HebbianFunction.backward (the Hebbian weight update) is training-only
    # and does not affect the forward output, so it is not implemented here.

    y = hebbian_mlp_forward(x, w1, w2, tile_b=8)   # default bf16 streams
    y = jax.block_until_ready(y)

    y_ref_bf16 = _reference_forward_bf16(x, w1, w2)   # same casts as the kernel
    y_ref_f32 = _reference_forward_f32(x, w1, w2)     # exact module semantics

    assert y.shape == (batch, num_outputs)
    # Structural parity (same bf16 casts, f32 accumulation): near-exact match.
    assert jnp.allclose(y, y_ref_bf16, atol=2e-3, rtol=2e-3), \
        float(jnp.max(jnp.abs(y - y_ref_bf16)))
    # Module-semantics parity: bf16 input stream vs pure-f32 torch forward.
    assert jnp.allclose(y, y_ref_f32, atol=2e-2, rtol=2e-2), \
        float(jnp.max(jnp.abs(y - y_ref_f32)))
    # Softmax rows sum to 1 (exact f32 divide in-kernel).
    assert jnp.allclose(jnp.sum(y, axis=1), jnp.ones((batch,)), atol=1e-3)

    print("KERNEL_OK")
</pallas_src>

<mosaic_0001>
module attributes {stable_mosaic.version = 11 : i64} {
  func.func @_hebbian_mlp_kernel(%arg0: i32, %arg1: memref<8x64xbf16, #tpu.memory_space<vmem>>, %arg2: memref<64x32xbf16, #tpu.memory_space<vmem>>, %arg3: memref<32x10xbf16, #tpu.memory_space<vmem>>, %arg4: memref<8x10xf32, #tpu.memory_space<vmem>>) attributes {dimension_semantics = [#tpu.dimension_semantics<parallel>], iteration_bounds = array<i64: 3>, scalar_prefetch = 0 : i64, scratch_operands = 0 : i64, tpu.core_type = #tpu.core_type<tc>, window_params = [{transform_indices = @transform_0, window_bounds = array<i64: 8, 64>}, {pipeline_mode = #tpu.pipeline_mode<synchronous>, transform_indices = @transform_1, window_bounds = array<i64: 64, 32>}, {pipeline_mode = #tpu.pipeline_mode<synchronous>, transform_indices = @transform_2, window_bounds = array<i64: 32, 10>}, {transform_indices = @transform_3, window_bounds = array<i64: 8, 10>}]} {
    %c0 = arith.constant 0 : index
    %c0_0 = arith.constant 0 : index
    %0 = vector.load %arg1[%c0, %c0_0] : memref<8x64xbf16, #tpu.memory_space<vmem>>, vector<8x64xbf16>
    %c0_1 = arith.constant 0 : index
    %c0_2 = arith.constant 0 : index
    %1 = vector.load %arg2[%c0_1, %c0_2] : memref<64x32xbf16, #tpu.memory_space<vmem>>, vector<64x32xbf16>
    %c0_3 = arith.constant 0 : index
    %c0_4 = arith.constant 0 : index
    %2 = vector.load %arg3[%c0_3, %c0_4] : memref<32x10xbf16, #tpu.memory_space<vmem>>, vector<32x10xbf16>
    %cst = arith.constant dense<0.000000e+00> : vector<8x32xf32>
    %3 = tpu.matmul %0, %1, %cst {dimension_numbers = #tpu.dot_dimension_numbers<[1], [0], [0], [1], [0, 0, 1, 1], [], []>} : vector<8x64xbf16>, vector<64x32xbf16>, vector<8x32xf32> -> vector<8x32xf32>
    %4 = arith.negf %3 : vector<8x32xf32>
    %5 = math.exp %4 : vector<8x32xf32>
    %cst_5 = arith.constant 1.000000e+00 : f32
    %6 = vector.broadcast %cst_5 : f32 to vector<8x32xf32>
    %7 = arith.addf %6, %5 : vector<8x32xf32>
    %8 = arith.divf %6, %7 : vector<8x32xf32>
    %9 = arith.truncf %8 : vector<8x32xf32> to vector<8x32xbf16>
    %cst_6 = arith.constant dense<0.000000e+00> : vector<8x10xf32>
    %10 = tpu.matmul %9, %2, %cst_6 {dimension_numbers = #tpu.dot_dimension_numbers<[1], [0], [0], [1], [0, 0, 1, 1], [], []>} : vector<8x32xbf16>, vector<32x10xbf16>, vector<8x10xf32> -> vector<8x10xf32>
    %cst_7 = arith.constant dense<0xFF800000> : vector<8xf32>
    %11 = vector.multi_reduction <maximumf>, %10, %cst_7 [1] : vector<8x10xf32> to vector<8xf32>
    %12 = vector.shape_cast %11 : vector<8xf32> to vector<8x1xf32>
    %13 = vector.broadcast %12 : vector<8x1xf32> to vector<8x10xf32>
    %14 = arith.subf %10, %13 : vector<8x10xf32>
    %15 = math.exp %14 : vector<8x10xf32>
    %cst_8 = arith.constant dense<0.000000e+00> : vector<8xf32>
    %16 = vector.multi_reduction <add>, %15, %cst_8 [1] : vector<8x10xf32> to vector<8xf32>
    %17 = vector.shape_cast %16 : vector<8xf32> to vector<8x1xf32>
    %18 = vector.broadcast %17 : vector<8x1xf32> to vector<8x10xf32>
    %19 = arith.divf %15, %18 : vector<8x10xf32>
    %c0_9 = arith.constant 0 : index
    %c0_10 = arith.constant 0 : index
    %20 = vector.load %arg4[%c0_9, %c0_10] : memref<8x10xf32, #tpu.memory_space<vmem>>, vector<8x10xf32>
    tpu.vector_store %arg4[%c0_9, %c0_10], %19 {strides = array<i32>} : memref<8x10xf32, #tpu.memory_space<vmem>>, vector<8x10xf32>,
    return
  }
  func.func @transform_0(%arg0: i32) -> (i32, i32) {
    %c0_i32 = arith.constant 0 : i32
    %c0_i32_0 = arith.constant 0 : i32
    return %arg0, %c0_i32 : i32, i32
  }
  func.func @transform_1(%arg0: i32) -> (i32, i32) {
    %c0_i32 = arith.constant 0 : i32
    %c0_i32_0 = arith.constant 0 : i32
    %c0_i32_1 = arith.constant 0 : i32
    return %c0_i32, %c0_i32_0 : i32, i32
  }
  func.func @transform_2(%arg0: i32) -> (i32, i32) {
    %c0_i32 = arith.constant 0 : i32
    %c0_i32_0 = arith.constant 0 : i32
    %c0_i32_1 = arith.constant 0 : i32
    return %c0_i32, %c0_i32_0 : i32, i32
  }
  func.func @transform_3(%arg0: i32) -> (i32, i32) {
    %c0_i32 = arith.constant 0 : i32
    %c0_i32_0 = arith.constant 0 : i32
    return %arg0, %c0_i32 : i32, i32
  }
}

</mosaic_0001>

<llo_original>
// kernel: tpu_custom_call.1
$region0: #{tpu_custom_call.1}
  #allocation0 [shape = 'u32[]', space=smem, size = 0x4, offset = 0x4, fixed_abs, tag = 'smem constant byte address 0x4 - core index']
  #allocation1 [shape = 'u32[144,128]{1,0:T(1,128)}', space=vmem, size = 0x12000, scoped, tag = 'internal scratch']
  %s0 = inlined_call_operand.vmem [shape: bf16[20,64], index: 0, kind: input, shape index: {}]
  %s1 = inlined_call_operand.vmem [shape: bf16[64,32], index: 1, kind: input, shape index: {}]
  %s2 = inlined_call_operand.vmem [shape: bf16[32,10], index: 2, kind: input, shape index: {}]
  %s3 = inlined_call_operand.vmem [shape: f32[20,10], index: 3, kind: output, shape index: {}]
  %s4 = sld [smem:[#allocation0]]
  $region45: #{tpu_custom_call.1} parent=0
    _
  %s6 = ssub.s32 1, %s4
  %s7 = scalar_select 0, %s6, %s4
  loop: start=0, step=1, limit=5
  $region2: #{tpu_custom_call.1} parent=0 // loop_pre_header
    _
  $region3: #{tpu_custom_call.1} parent=0 // loop_header
    %s9 = sphi 0, %s13
    %p10 = scmp.ge.s32.totalorder %s9, 5
    %s19 = sphi 0, %s21
    %s22 = sphi 0, %s19
    %s23 = sphi 0, %s22
    %s39 = sphi 0, %s23
    %s43 = sphi 0, %s43
    %s45 = sphi 0, %s43
    %s46 = sphi 0, %s45
    %s60 = sphi 0, %s46
    %s64 = sphi 0, %s64
    %s66 = sphi 0, %s64
    %s67 = sphi 0, %s66
    %s81 = sphi 0, %s67
    %s87 = sphi 0, %s89
    %s90 = sphi 0, %s87
    %s91 = sphi 0, %s90
    %s107 = sphi 0, %s91
  $region4: #{tpu_custom_call.1} parent=0 // loop_header_branch
    %12 = sbr.rel (%p10) target = $region8
  $region5: #{tpu_custom_call.1} parent=0 // loop_body
    %s14 = ssub.s32 %s9, 1
    %s15 = ssub.s32 %s9, 2
    %s16 = sadd.s32 %s9, 1
    %s17 = ssub.s32 %s9, %s16
    %p18 = scmp.eq.s32.totalorder %s17, 0
    %s20 = sadd.s32 %s19, 1
    %s21 = scalar_select %p18, %s19, %s20
    %p24 = pneg %p18
    %p25 = scmp.eq.s32.totalorder %s9, 2
    %p26 = por %p24, %p25
    %p27 = scmp.ne.s32.totalorder %s19, %s22
    %p28 = scmp.eq.s32.totalorder %s9, 0
    %p29 = por %p27, %p28
    %p30 = scmp.ne.s32.totalorder %s19, %s22
    %p31 = scmp.eq.s32.totalorder %s14, 2
    %p32 = por %p30, %p31
    %p33 = scmp.ne.s32.totalorder %s22, %s23
    %p34 = scmp.eq.s32.totalorder %s14, 0
    %p35 = por %p33, %p34
    %p36 = scmp.ne.s32.totalorder %s22, %s23
    %p37 = scmp.eq.s32.totalorder %s15, 2
    %p38 = por %p36, %p37
    %p40 = scmp.ne.s32.totalorder %s23, %s39
    %p41 = scmp.eq.s32.totalorder %s15, 0
    %p42 = por %p40, %p41
    %s44 = sadd.s32 %s43, 1
    %p47 = scmp.eq.s32.totalorder %s9, 2
    %p48 = scmp.ne.s32.totalorder %s43, %s45
    %p49 = scmp.eq.s32.totalorder %s9, 0
    %p50 = por %p48, %p49
    %p51 = scmp.ne.s32.totalorder %s43, %s45
    %p52 = scmp.eq.s32.totalorder %s14, 2
    %p53 = por %p51, %p52
    %p54 = scmp.ne.s32.totalorder %s45, %s46
    %p55 = scmp.eq.s32.totalorder %s14, 0
    %p56 = por %p54, %p55
    %p57 = scmp.ne.s32.totalorder %s45, %s46
    %p58 = scmp.eq.s32.totalorder %s15, 2
    %p59 = por %p57, %p58
    %p61 = scmp.ne.s32.totalorder %s46, %s60
    %p62 = scmp.eq.s32.totalorder %s15, 0
    %p63 = por %p61, %p62
    %s65 = sadd.s32 %s64, 1
    %p68 = scmp.eq.s32.totalorder %s9, 2
    %p69 = scmp.ne.s32.totalorder %s64, %s66
    %p70 = scmp.eq.s32.totalorder %s9, 0
    %p71 = por %p69, %p70
    %p72 = scmp.ne.s32.totalorder %s64, %s66
    %p73 = scmp.eq.s32.totalorder %s14, 2
    %p74 = por %p72, %p73
    %p75 = scmp.ne.s32.totalorder %s66, %s67
    %p76 = scmp.eq.s32.totalorder %s14, 0
    %p77 = por %p75, %p76
    %p78 = scmp.ne.s32.totalorder %s66, %s67
    %p79 = scmp.eq.s32.totalorder %s15, 2
    %p80 = por %p78, %p79
    %p82 = scmp.ne.s32.totalorder %s67, %s81
    %p83 = scmp.eq.s32.totalorder %s15, 0
    %p84 = por %p82, %p83
    %s85 = ssub.s32 %s9, %s16
    %p86 = scmp.eq.s32.totalorder %s85, 0
    %s88 = sadd.s32 %s87, 1
    %s89 = scalar_select %p86, %s87, %s88
    %p92 = pneg %p86
    %p93 = scmp.eq.s32.totalorder %s9, 2
    %p94 = por %p92, %p93
    %p95 = scmp.ne.s32.totalorder %s87, %s90
    %p96 = scmp.eq.s32.totalorder %s9, 0
    %p97 = por %p95, %p96
    %p98 = scmp.ne.s32.totalorder %s87, %s90
    %p99 = scmp.eq.s32.totalorder %s14, 2
    %p100 = por %p98, %p99
    %p101 = scmp.ne.s32.totalorder %s90, %s91
    %p102 = scmp.eq.s32.totalorder %s14, 0
    %p103 = por %p101, %p102
    %p104 = scmp.ne.s32.totalorder %s90, %s91
    %p105 = scmp.eq.s32.totalorder %s15, 2
    %p106 = por %p104, %p105
    %p108 = scmp.ne.s32.totalorder %s91, %s107
    %p109 = scmp.eq.s32.totalorder %s15, 0
    %p110 = por %p108, %p109
    %p111 = scmp.le.s32.totalorder 1, %s9
    %p112 = scmp.lt.s32.totalorder %s9, 4
    %p113 = pnand %p111, %p112
    %p114 = pneg %p113
    // Predicated region
    $region9: #{tpu_custom_call.1} parent=5 // pred_check
      _
    $region10: #{tpu_custom_call.1} parent=5 // pred_check_branch
      %116 = sbr.rel (%p113) target = $region12
    $region11: #{tpu_custom_call.1} parent=5 // pred_region
      %s117 = ssub.s32 %s9, 1
      // Predicated region
      $region13: #{tpu_custom_call.1} parent=11 // pred_check
        %p118 = pneg %p56
      $region14: #{tpu_custom_call.1} parent=11 // pred_check_branch
        %120 = sbr.rel (%p118) target = $region16
      $region15: #{tpu_custom_call.1} parent=11 // pred_region
        _
      $region16: #{tpu_custom_call.1} parent=11 // pred_fallthru
        _
      // Predicated region
      $region17: #{tpu_custom_call.1} parent=11 // pred_check
        %p121 = pneg %p77
      $region18: #{tpu_custom_call.1} parent=11 // pred_check_branch
        %123 = sbr.rel (%p121) target = $region20
      $region19: #{tpu_custom_call.1} parent=11 // pred_region
        _
      $region20: #{tpu_custom_call.1} parent=11 // pred_fallthru
        _
    $region12: #{tpu_custom_call.1} parent=5 // pred_fallthru
      _
    %p124 = scmp.lt.s32.totalorder %s9, 3
    // Predicated region
    $region21: #{tpu_custom_call.1} parent=5 // pred_check
      %p125 = pneg %p124
    $region22: #{tpu_custom_call.1} parent=5 // pred_check_branch
      %127 = sbr.rel (%p125) target = $region24
    $region23: #{tpu_custom_call.1} parent=5 // pred_region
      // Predicated region
      $region25: #{tpu_custom_call.1} parent=23 // pred_check
        %p128 = pneg %p29
      $region26: #{tpu_custom_call.1} parent=23 // pred_check_branch
        %130 = sbr.rel (%p128) target = $region28
      $region27: #{tpu_custom_call.1} parent=23 // pred_region
        %p131 = scmp.lt.s32.totalorder %s9, 2
        %s132 = scalar_select %p131, %s9, 2
        %s133 = smul.addr %s132, 4
        %s134 = scalar_lea.vmem %s0, %s133
      $region28: #{tpu_custom_call.1} parent=23 // pred_fallthru
        _
    $region24: #{tpu_custom_call.1} parent=5 // pred_fallthru
      _
    %p135 = scmp.le.s32.totalorder 1, %s9
    %p136 = scmp.lt.s32.totalorder %s9, 4
    %p137 = pnand %p135, %p136
    %p138 = pneg %p137
    // Predicated region
    $region29: #{tpu_custom_call.1} parent=5 // pred_check
      _
    $region30: #{tpu_custom_call.1} parent=5 // pred_check_branch
      %140 = sbr.rel (%p137) target = $region32
    $region31: #{tpu_custom_call.1} parent=5 // pred_region
      %s141 = ssub.s32 %s9, 1
      %p142 = scmp.lt.s32.totalorder %s14, 2
      %s143 = scalar_select %p142, %s14, 2
      %s144 = smul.addr %s143, 4
      %s145 = scalar_lea.vmem %s0, %s144
      %p146 = pneg %p35
      %p147 = pneg %p32
      %p148 = pneg %p56
      %p149 = pneg %p53
      %p150 = pneg %p77
      %p151 = pneg %p74
      %p152 = pneg %p103
      %p153 = pneg %p100
      %p154 = scmp.lt.s32.totalorder %s14, 2
      %s155 = scalar_select %p154, %s14, 2
      %s156 = smul.addr %s155, 8
      %s157 = scalar_lea.vmem %s3, %s156
      %p158 = scmp.lt.s32.totalorder %s14, 2
      %s159 = scalar_select %p158, %s14, 2
      %s160 = smul.addr %s159, 4
      %s161 = scalar_lea.vmem %s0, %s160
      %p162 = scmp.lt.s32.totalorder %s14, 2
      %s163 = scalar_select %p162, %s14, 2
      %s164 = smul.addr %s163, 8
      %s165 = scalar_lea.vmem %s3, %s164
      %v167 = vld [vmem:[%s161] sm:$0xf]
      %v168 = vld [vmem:[%s1] sm:$0xf]
      %v169 = vld [vmem:[%s1 + $0x4] sm:$0xf]
      %v170 = vld [vmem:[%s1 + $0x8] sm:$0xf]
      %v171 = vld [vmem:[%s1 + $0xc] sm:$0xf]
      %v172 = vld [vmem:[%s1 + $0x10] sm:$0xf]
      %v173 = vld [vmem:[%s1 + $0x14] sm:$0xf]
      %v174 = vld [vmem:[%s1 + $0x18] sm:$0xf]
      %v175 = vld [vmem:[%s1 + $0x1c] sm:$0xf]
      %v176 = vld [vmem:[%s2] sm:$0xf]
      %v177 = vld [vmem:[%s2 + $0x4] sm:$0xf]
      %v178 = vld [vmem:[%s2 + $0x8] sm:$0xf]
      %v179 = vld [vmem:[%s2 + $0xc] sm:$0xf]
      %v188 = vunpack.c.l.b16 %v168
      %v189 = vunpack.c.l.b16 %v169
      %v190 = vunpack.c.l.b16 %v170
      %v191 = vunpack.c.l.b16 %v171
      %v192 = vunpack.c.l.b16 %v172
      %v193 = vunpack.c.l.b16 %v173
      %v194 = vunpack.c.l.b16 %v174
      %v195 = vunpack.c.l.b16 %v175
      %v196 = vpack.c.b16 %v189, %v188
      %v197 = vpack.c.b16 %v191, %v190
      %v198 = vpack.c.b16 %v193, %v192
      %v199 = vpack.c.b16 %v195, %v194
      %vm204 = vcmask 523264
      %v206 = vsel %vm204, %v167, 0
      %208 = vmatprep.subr.bf16.mxu0 0
      %209 = vmatpush1.bf16.msra.mxu0 %v196
      %210 = vmatprep.subr.bf16.mxu0 0
      %211 = vmatpush1.bf16.msra.mxu0 %v197
      %212 = vmatprep.subr.bf16.mxu0 0
      %213 = vmatpush1.bf16.msra.mxu0 %v198
      %214 = vmatprep.subr.bf16.mxu0 0
      %215 = vmatpush1.bf16.msra.mxu0 %v199
      %216 = vmatprep.subr.bf16.mxu0 0
      %217 = vmatpush1.bf16.msra.mxu0 0
      %218 = vmatprep.subr.bf16.mxu0 0
      %219 = vmatpush1.bf16.msra.mxu0 0
      %220 = vmatprep.subr.bf16.mxu0 0
      %221 = vmatpush1.bf16.msra.mxu0 0
      %222 = vmatprep.subr.bf16.mxu0 0
      %223 = vmatpush1.bf16.msra.mxu0 0
      %224 = vmatprep.subr.bf16.mxu0 0
      %225 = vmatpush1.bf16.msra.mxu0 0
      %226 = vmatprep.subr.bf16.mxu0 0
      %227 = vmatpush1.bf16.msra.mxu0 0
      %228 = vmatprep.subr.bf16.mxu0 0
      %229 = vmatpush1.bf16.msra.mxu0 0
      %230 = vmatprep.subr.bf16.mxu0 0
      %231 = vmatpush1.bf16.msra.mxu0 0
      %232 = vmatprep.subr.bf16.mxu0 0
      %233 = vmatpush1.bf16.msra.mxu0 0
      %234 = vmatprep.subr.bf16.mxu0 0
      %235 = vmatpush1.bf16.msra.mxu0 0
      %236 = vmatprep.subr.bf16.mxu0 0
      %237 = vmatpush1.bf16.msra.mxu0 0
      %238 = vmatprep.subr.bf16.mxu0 0
      %239 = vmatpush1.bf16.msra.mxu0 0
      %240 = vmatprep.mubr.bf16.mxu0 0
      %241 = vmatmul.mubr.bf16.gmra.mrb[0].mxu0 %v206
      %v242 = vpop.f32.mrb[0].mxu0
      %v243 = vadd.f32 0.0, %v242
      %v244 = vpop.f32.mrb[0].mxu0
      %v245 = vpop.f32.mrb[0].mxu0
      %v246 = vpop.f32.mrb[0].mxu0
      %247 = vdwg.mxu0
      %v248 = vxor.u32 %v243, 2147483648
      %v249 = vmul.f32 %v248, 1.442695
      %v250 = vpow.pop %v249
      %v251 = vadd.f32 %v250, 1.0
      %v252 = vrcp.pop %v251
      %v253 = vmul.f32 1.0, %v252
      %v254 = vpack.c.bf16 %v253, %v253
      %v259 = vunpack.c.l.b16 %v176
      %v260 = vunpack.c.l.b16 %v177
      %v261 = vunpack.c.l.b16 %v178
      %v262 = vunpack.c.l.b16 %v179
      %v263 = vpack.c.b16 %v260, %v259
      %v264 = vpack.c.b16 %v262, %v261
      %vm267 = vcmask 261120
      %v269 = vsel %vm267, %v254, 0
      %271 = vmatprep.subr.bf16.mxu0 0
      %272 = vmatpush1.bf16.msra.mxu0 %v263
      %273 = vmatprep.subr.bf16.mxu0 0
      %274 = vmatpush1.bf16.msra.mxu0 %v264
      %275 = vmatprep.subr.bf16.mxu0 0
      %276 = vmatpush1.bf16.msra.mxu0 0
      %277 = vmatprep.subr.bf16.mxu0 0
      %278 = vmatpush1.bf16.msra.mxu0 0
      %279 = vmatprep.subr.bf16.mxu0 0
      %280 = vmatpush1.bf16.msra.mxu0 0
      %281 = vmatprep.subr.bf16.mxu0 0
      %282 = vmatpush1.bf16.msra.mxu0 0
      %283 = vmatprep.subr.bf16.mxu0 0
      %284 = vmatpush1.bf16.msra.mxu0 0
      %285 = vmatprep.subr.bf16.mxu0 0
      %286 = vmatpush1.bf16.msra.mxu0 0
      %287 = vmatprep.subr.bf16.mxu0 0
      %288 = vmatpush1.bf16.msra.mxu0 0
      %289 = vmatprep.subr.bf16.mxu0 0
      %290 = vmatpush1.bf16.msra.mxu0 0
      %291 = vmatprep.subr.bf16.mxu0 0
      %292 = vmatpush1.bf16.msra.mxu0 0
      %293 = vmatprep.subr.bf16.mxu0 0
      %294 = vmatpush1.bf16.msra.mxu0 0
      %295 = vmatprep.subr.bf16.mxu0 0
      %296 = vmatpush1.bf16.msra.mxu0 0
      %297 = vmatprep.subr.bf16.mxu0 0
      %298 = vmatpush1.bf16.msra.mxu0 0
      %299 = vmatprep.subr.bf16.mxu0 0
      %300 = vmatpush1.bf16.msra.mxu0 0
      %301 = vmatprep.subr.bf16.mxu0 0
      %302 = vmatpush1.bf16.msra.mxu0 0
      %303 = vmatprep.mubr.bf16.mxu0 0
      %304 = vmatmul.mubr.bf16.gmra.mrb[0].mxu0 %v269
      %v305 = vpop.f32.mrb[0].mxu0
      %v306 = vadd.f32 0.0, %v305
      %v307 = vpop.f32.mrb[0].mxu0
      %v308 = vpop.f32.mrb[0].mxu0
      %v309 = vpop.f32.mrb[0].mxu0
      %310 = vdwg.mxu0
      %vm311 = vcmask 80896
      %v312 = vsel %vm311, %v306, -inf
      %313 = vmax.xlane.f32.xlu0 %v312
      %v314 = vpop.xlane.xlu0 %313
      %v315 = vsub.f32 %v306, %v314
      %v316 = vmul.f32 %v315, 1.442695
      %v317 = vpow.pop %v316
      %v318 = vsel %vm311, %v317, 0.0
      %319 = vadd.xlane.f32.xlu0 %v318
      %v320 = vpop.xlane.xlu0 %319
      %v321 = vrcp.pop %v320
      %v322 = vmul.f32 %v317, %v321
      %323 = vst.msk [vmem:[%s165] sm:$0xff] %vm311, %v322
      %p324 = scmp.lt.s32.totalorder %s14, 2
      %s325 = scalar_select %p324, %s14, 2
      %s326 = smul.addr %s325, 8
      %s327 = scalar_lea.vmem %s3, %s326
      // Predicated region
      $region33: #{tpu_custom_call.1} parent=31 // pred_check
        %p328 = pneg %p100
      $region34: #{tpu_custom_call.1} parent=31 // pred_check_branch
        %330 = sbr.rel (%p328) target = $region36
      $region35: #{tpu_custom_call.1} parent=31 // pred_region
        _
      $region36: #{tpu_custom_call.1} parent=31 // pred_fallthru
        _
    $region32: #{tpu_custom_call.1} parent=5 // pred_fallthru
      _
    %p331 = scmp.le.s32.totalorder 2, %s9
    // Predicated region
    $region37: #{tpu_custom_call.1} parent=5 // pred_check
      %p332 = pneg %p331
    $region38: #{tpu_custom_call.1} parent=5 // pred_check_branch
      %334 = sbr.rel (%p332) target = $region40
    $region39: #{tpu_custom_call.1} parent=5 // pred_region
      %s335 = ssub.s32 %s9, 2
      // Predicated region
      $region41: #{tpu_custom_call.1} parent=39 // pred_check
        %p336 = pneg %p106
      $region42: #{tpu_custom_call.1} parent=39 // pred_check_branch
        %338 = sbr.rel (%p336) target = $region44
      $region43: #{tpu_custom_call.1} parent=39 // pred_region
        %p339 = scmp.lt.s32.totalorder %s15, 2
        %s340 = scalar_select %p339, %s15, 2
        %s341 = smul.addr %s340, 8
        %s342 = scalar_lea.vmem %s3, %s341
      $region44: #{tpu_custom_call.1} parent=39 // pred_fallthru
        _
    $region40: #{tpu_custom_call.1} parent=5 // pred_fallthru
      _
  $region6: #{tpu_custom_call.1} parent=0 // loop_footer
    %s13 = sadd.s32 1, %s9
  $region7: #{tpu_custom_call.1} parent=0 // loop_footer_branch
    %8 = sbr.rel target = $region3
  $region8: #{tpu_custom_call.1} parent=0 // loop_exit
    _

</llo_original>
